<compile_context>
chip_gen: v7x
topology: tpu7x:2x2x1
jax: 0.10.0
libtpu: 0.0.40
codegen_flags: <defaults>
</compile_context>

<pallas_src>
import jax
import jax.numpy as jnp
from jax.experimental import pallas as pl
from jax.experimental.pallas import tpu as pltpu

_LANES = 128


def _make_kernel(tile_rows, n_mel, n_bt):
    inv_mel = 1.0 / float(n_mel)
    inv_bt = 1.0 / float(n_bt)

    def kernel(mel_ref, mel_t_ref, dur_p_ref, dur_t_ref,
               en_p_ref, en_t_ref, pi_p_ref, pi_t_ref,
               out_ref, acc_ref):
        step = pl.program_id(0)

        @pl.when(step == 0)
        def _init():
            acc_ref[...] = jnp.zeros_like(acc_ref)

        # --- mel L1 partial sum: VPU-only work in the hot loop -------------
        diff = jnp.abs(mel_ref[...].astype(jnp.float32)
                       - mel_t_ref[...].astype(jnp.float32))
        acc_ref[...] += jnp.sum(diff.reshape(tile_rows // 8, 8, _LANES), axis=0)

        # --- epilogue: cross-lane reduce + the three tiny MSE losses -------
        @pl.when(step == pl.num_programs(0) - 1)
        def _finalize():
            mel_loss = jnp.sum(acc_ref[...], axis=(0, 1), keepdims=True) * inv_mel

            # duration MSE in log(1 + x) domain (matches torch.log(x.float()+1))
            dur_d = (jnp.log(dur_p_ref[...].astype(jnp.float32) + 1.0)
                     - jnp.log(dur_t_ref[...].astype(jnp.float32) + 1.0))
            dur_loss = jnp.sum(dur_d * dur_d, axis=(0, 1), keepdims=True) * inv_bt

            en_d = en_t_ref[...].astype(jnp.float32) - en_p_ref[...].astype(jnp.float32)
            en_loss = jnp.sum(en_d * en_d, axis=(0, 1), keepdims=True) * inv_bt

            pi_d = pi_t_ref[...].astype(jnp.float32) - pi_p_ref[...].astype(jnp.float32)
            pi_loss = jnp.sum(pi_d * pi_d, axis=(0, 1), keepdims=True) * inv_bt

            # Pack the four scalars into one lane-packed (1, 4) store.
            lane = jax.lax.broadcasted_iota(jnp.int32, (1, 4), 1)
            out_ref[...] = (jnp.where(lane == 0, mel_loss, 0.0)
                            + jnp.where(lane == 1, dur_loss, 0.0)
                            + jnp.where(lane == 2, en_loss, 0.0)
                            + jnp.where(lane == 3, pi_loss, 0.0))

    return kernel


def fastspeech2_loss(mel, duration_predicted, energy_predicted, pitch_predicted,
                     mel_target, duration_predictor_target, pitch_target,
                     energy_target, *, max_tile_rows=1024):
    B, T, M = mel.shape
    n_mel = B * T * M
    n_bt = B * T

    # Lane-dense flattening: pad to full (8, 128)-aligned tiles of 128 lanes.
    rows = -(-n_mel // _LANES)
    rows = ((rows + 7) // 8) * 8                       # multiple of 8 sublanes
    tile_rows = max(8, min(max_tile_rows, rows))
    tile_rows = ((tile_rows + 7) // 8) * 8             # keep multiple of 8
    total_rows = ((rows + tile_rows - 1) // tile_rows) * tile_rows
    pad = total_rows * _LANES - n_mel

    def _flat(x):
        x = x.reshape(-1)
        if pad:
            x = jnp.pad(x, (0, pad))                   # zero pad: |0-0| adds 0
        return x.reshape(total_rows, _LANES)

    mel2 = _flat(mel)
    mel_t2 = _flat(mel_target)

    grid = (total_rows // tile_rows,)
    mel_spec = pl.BlockSpec((tile_rows, _LANES), lambda i: (i, 0))
    small_spec = pl.BlockSpec((B, T), lambda i: (0, 0))   # resident, DMA'd once

    kernel = _make_kernel(tile_rows, n_mel, n_bt)

    out = pl.pallas_call(
        kernel,
        out_shape=jax.ShapeDtypeStruct((1, 4), jnp.float32),
        grid_spec=pltpu.PrefetchScalarGridSpec(
            num_scalar_prefetch=0,
            grid=grid,
            in_specs=[mel_spec, mel_spec,
                      small_spec, small_spec,
                      small_spec, small_spec,
                      small_spec, small_spec],
            out_specs=pl.BlockSpec((1, 4), lambda i: (0, 0)),
            scratch_shapes=[pltpu.VMEM((8, _LANES), jnp.float32)],
        ),
        compiler_params=pltpu.CompilerParams(
            dimension_semantics=("arbitrary",)),
    )(mel2, mel_t2,
      duration_predicted, duration_predictor_target,
      energy_predicted, energy_target,
      pitch_predicted, pitch_target)

    return out[0, 0], out[0, 1], out[0, 2], out[0, 3]


def _reference(mel, dur_p, en_p, pi_p, mel_t, dur_t, pi_t, en_t):
    mel_loss = jnp.mean(jnp.abs(mel - mel_t))
    dur_loss = jnp.mean(
        (jnp.log(dur_p.astype(jnp.float32) + 1.0)
         - jnp.log(dur_t.astype(jnp.float32) + 1.0)) ** 2)
    en_loss = jnp.mean((en_t - en_p) ** 2)
    pi_loss = jnp.mean((pi_t - pi_p) ** 2)
    return mel_loss, dur_loss, en_loss, pi_loss


if __name__ == "__main__":
    B, T, M = 2, 16, 80
    key = jax.random.PRNGKey(0)
    keys = jax.random.split(key, 8)

    mel = jax.random.normal(keys[0], (B, T, M), dtype=jnp.float32)
    mel_target = jax.random.normal(keys[1], (B, T, M), dtype=jnp.float32)
    # duration predictor outputs are positive; targets are integer frame counts
    duration_predicted = jax.random.uniform(keys[2], (B, T), dtype=jnp.float32,
                                            minval=0.0, maxval=10.0)
    duration_predictor_target = jax.random.randint(keys[3], (B, T), 0, 10,
                                                   dtype=jnp.int32)
    energy_predicted = jax.random.normal(keys[4], (B, T), dtype=jnp.float32)
    energy_target = jax.random.normal(keys[5], (B, T), dtype=jnp.float32)
    pitch_predicted = jax.random.normal(keys[6], (B, T), dtype=jnp.float32)
    pitch_target = jax.random.normal(keys[7], (B, T), dtype=jnp.float32)

    args = (mel, duration_predicted, energy_predicted, pitch_predicted,
            mel_target, duration_predictor_target, pitch_target, energy_target)

    ref = _reference(*args)

    # Run once with the production tile (single grid step at this size) and
    # once with a tiny tile to exercise the multi-step pipelined reduction.
    for tile in (1024, 8):
        out = fastspeech2_loss(*args, max_tile_rows=tile)
        out = jax.block_until_ready(out)
        for got, want in zip(out, ref):
            g, w = float(got), float(want)
            assert abs(g - w) < 1e-4 + 1e-5 * abs(w), (tile, g, w)

    print("KERNEL_OK")
</pallas_src>

<mosaic_0001>
module attributes {stable_mosaic.version = 11 : i64} {
  func.func @kernel(%arg0: i32, %arg1: memref<24x128xf32, #tpu.memory_space<vmem>>, %arg2: memref<24x128xf32, #tpu.memory_space<vmem>>, %arg3: memref<2x16xf32, #tpu.memory_space<vmem>>, %arg4: memref<2x16xi32, #tpu.memory_space<vmem>>, %arg5: memref<2x16xf32, #tpu.memory_space<vmem>>, %arg6: memref<2x16xf32, #tpu.memory_space<vmem>>, %arg7: memref<2x16xf32, #tpu.memory_space<vmem>>, %arg8: memref<2x16xf32, #tpu.memory_space<vmem>>, %arg9: memref<1x4xf32, #tpu.memory_space<vmem>>, %arg10: memref<8x128xf32, #tpu.memory_space<vmem>>) attributes {dimension_semantics = [#tpu.dimension_semantics<arbitrary>], iteration_bounds = array<i64: 1>, scalar_prefetch = 0 : i64, scratch_operands = 1 : i64, tpu.core_type = #tpu.core_type<tc>, window_params = [{transform_indices = @transform_0, window_bounds = array<i64: 24, 128>}, {transform_indices = @transform_1, window_bounds = array<i64: 24, 128>}, {pipeline_mode = #tpu.pipeline_mode<synchronous>, transform_indices = @transform_2, window_bounds = array<i64: 2, 16>}, {pipeline_mode = #tpu.pipeline_mode<synchronous>, transform_indices = @transform_3, window_bounds = array<i64: 2, 16>}, {pipeline_mode = #tpu.pipeline_mode<synchronous>, transform_indices = @transform_4, window_bounds = array<i64: 2, 16>}, {pipeline_mode = #tpu.pipeline_mode<synchronous>, transform_indices = @transform_5, window_bounds = array<i64: 2, 16>}, {pipeline_mode = #tpu.pipeline_mode<synchronous>, transform_indices = @transform_6, window_bounds = array<i64: 2, 16>}, {pipeline_mode = #tpu.pipeline_mode<synchronous>, transform_indices = @transform_7, window_bounds = array<i64: 2, 16>}, {pipeline_mode = #tpu.pipeline_mode<synchronous>, transform_indices = @transform_8, window_bounds = array<i64: 1, 4>}]} {
    %c0_i32 = arith.constant 0 : i32
    %0 = arith.cmpi eq, %arg0, %c0_i32 : i32
    %1 = arith.extui %0 : i1 to i32
    %c0_i32_0 = arith.constant 0 : i32
    %2 = arith.cmpi ne, %1, %c0_i32_0 : i32
    scf.if %2 {
      %cst_10 = arith.constant 0.000000e+00 : f32
      %15 = vector.broadcast %cst_10 : f32 to vector<8x128xf32>
      %c0_11 = arith.constant 0 : index
      %c0_12 = arith.constant 0 : index
      %16 = vector.load %arg10[%c0_11, %c0_12] : memref<8x128xf32, #tpu.memory_space<vmem>>, vector<8x128xf32>
      tpu.vector_store %arg10[%c0_11, %c0_12], %15 {strides = array<i32>} : memref<8x128xf32, #tpu.memory_space<vmem>>, vector<8x128xf32>,
    } else {
    }
    %c0 = arith.constant 0 : index
    %c0_1 = arith.constant 0 : index
    %3 = vector.load %arg1[%c0, %c0_1] : memref<24x128xf32, #tpu.memory_space<vmem>>, vector<24x128xf32>
    %c0_2 = arith.constant 0 : index
    %c0_3 = arith.constant 0 : index
    %4 = vector.load %arg2[%c0_2, %c0_3] : memref<24x128xf32, #tpu.memory_space<vmem>>, vector<24x128xf32>
    %5 = arith.subf %3, %4 : vector<24x128xf32>
    %6 = math.absf %5 : vector<24x128xf32>
    %c0_4 = arith.constant 0 : index
    %c0_5 = arith.constant 0 : index
    %7 = vector.load %arg10[%c0_4, %c0_5] : memref<8x128xf32, #tpu.memory_space<vmem>>, vector<8x128xf32>
    %8 = vector.shape_cast %6 : vector<24x128xf32> to vector<3x8x128xf32>
    %cst = arith.constant dense<0.000000e+00> : vector<8x128xf32>
    %9 = vector.multi_reduction <add>, %8, %cst [0] : vector<3x8x128xf32> to vector<8x128xf32>
    %10 = arith.addf %7, %9 : vector<8x128xf32>
    %c0_6 = arith.constant 0 : index
    %c0_7 = arith.constant 0 : index
    %11 = vector.load %arg10[%c0_6, %c0_7] : memref<8x128xf32, #tpu.memory_space<vmem>>, vector<8x128xf32>
    tpu.vector_store %arg10[%c0_6, %c0_7], %10 {strides = array<i32>} : memref<8x128xf32, #tpu.memory_space<vmem>>, vector<8x128xf32>,
    %c0_i32_8 = arith.constant 0 : i32
    %12 = arith.cmpi eq, %arg0, %c0_i32_8 : i32
    %13 = arith.extui %12 : i1 to i32
    %c0_i32_9 = arith.constant 0 : i32
    %14 = arith.cmpi ne, %13, %c0_i32_9 : i32
    scf.if %14 {
      %c0_10 = arith.constant 0 : index
      %c0_11 = arith.constant 0 : index
      %15 = vector.load %arg10[%c0_10, %c0_11] : memref<8x128xf32, #tpu.memory_space<vmem>>, vector<8x128xf32>
      %16 = vector.shape_cast %15 : vector<8x128xf32> to vector<1x8x128xf32>
      %cst_12 = arith.constant dense<0.000000e+00> : vector<1xf32>
      %17 = vector.multi_reduction <add>, %16, %cst_12 [1, 2] : vector<1x8x128xf32> to vector<1xf32>
      %18 = vector.shape_cast %17 : vector<1xf32> to vector<1x1x1xf32>
      %19 = vector.extract %18[0, 0, 0] : f32 from vector<1x1x1xf32>
      %20 = vector.broadcast %19 : f32 to vector<1x1xf32>
      %cst_13 = arith.constant 3.906250e-04 : f32
      %21 = vector.broadcast %cst_13 : f32 to vector<1x1xf32>
      %22 = arith.mulf %20, %21 : vector<1x1xf32>
      %c0_14 = arith.constant 0 : index
      %c0_15 = arith.constant 0 : index
      %23 = vector.load %arg3[%c0_14, %c0_15] : memref<2x16xf32, #tpu.memory_space<vmem>>, vector<2x16xf32>
      %cst_16 = arith.constant 1.000000e+00 : f32
      %24 = vector.broadcast %cst_16 : f32 to vector<2x16xf32>
      %25 = arith.addf %23, %24 : vector<2x16xf32>
      %26 = math.log %25 : vector<2x16xf32>
      %c0_17 = arith.constant 0 : index
      %c0_18 = arith.constant 0 : index
      %27 = vector.load %arg4[%c0_17, %c0_18] : memref<2x16xi32, #tpu.memory_space<vmem>>, vector<2x16xi32>
      %28 = arith.sitofp %27 : vector<2x16xi32> to vector<2x16xf32>
      %cst_19 = arith.constant 1.000000e+00 : f32
      %29 = vector.broadcast %cst_19 : f32 to vector<2x16xf32>
      %30 = arith.addf %28, %29 : vector<2x16xf32>
      %31 = math.log %30 : vector<2x16xf32>
      %32 = arith.subf %26, %31 : vector<2x16xf32>
      %33 = arith.mulf %32, %32 : vector<2x16xf32>
      %34 = vector.shape_cast %33 : vector<2x16xf32> to vector<1x2x16xf32>
      %cst_20 = arith.constant dense<0.000000e+00> : vector<1xf32>
      %35 = vector.multi_reduction <add>, %34, %cst_20 [1, 2] : vector<1x2x16xf32> to vector<1xf32>
      %36 = vector.shape_cast %35 : vector<1xf32> to vector<1x1x1xf32>
      %37 = vector.extract %36[0, 0, 0] : f32 from vector<1x1x1xf32>
      %38 = vector.broadcast %37 : f32 to vector<1x1xf32>
      %cst_21 = arith.constant 3.125000e-02 : f32
      %39 = vector.broadcast %cst_21 : f32 to vector<1x1xf32>
      %40 = arith.mulf %38, %39 : vector<1x1xf32>
      %c0_22 = arith.constant 0 : index
      %c0_23 = arith.constant 0 : index
      %41 = vector.load %arg6[%c0_22, %c0_23] : memref<2x16xf32, #tpu.memory_space<vmem>>, vector<2x16xf32>
      %c0_24 = arith.constant 0 : index
      %c0_25 = arith.constant 0 : index
      %42 = vector.load %arg5[%c0_24, %c0_25] : memref<2x16xf32, #tpu.memory_space<vmem>>, vector<2x16xf32>
      %43 = arith.subf %41, %42 : vector<2x16xf32>
      %44 = arith.mulf %43, %43 : vector<2x16xf32>
      %45 = vector.shape_cast %44 : vector<2x16xf32> to vector<1x2x16xf32>
      %cst_26 = arith.constant dense<0.000000e+00> : vector<1xf32>
      %46 = vector.multi_reduction <add>, %45, %cst_26 [1, 2] : vector<1x2x16xf32> to vector<1xf32>
      %47 = vector.shape_cast %46 : vector<1xf32> to vector<1x1x1xf32>
      %48 = vector.extract %47[0, 0, 0] : f32 from vector<1x1x1xf32>
      %49 = vector.broadcast %48 : f32 to vector<1x1xf32>
      %cst_27 = arith.constant 3.125000e-02 : f32
      %50 = vector.broadcast %cst_27 : f32 to vector<1x1xf32>
      %51 = arith.mulf %49, %50 : vector<1x1xf32>
      %c0_28 = arith.constant 0 : index
      %c0_29 = arith.constant 0 : index
      %52 = vector.load %arg8[%c0_28, %c0_29] : memref<2x16xf32, #tpu.memory_space<vmem>>, vector<2x16xf32>
      %c0_30 = arith.constant 0 : index
      %c0_31 = arith.constant 0 : index
      %53 = vector.load %arg7[%c0_30, %c0_31] : memref<2x16xf32, #tpu.memory_space<vmem>>, vector<2x16xf32>
      %54 = arith.subf %52, %53 : vector<2x16xf32>
      %55 = arith.mulf %54, %54 : vector<2x16xf32>
      %56 = vector.shape_cast %55 : vector<2x16xf32> to vector<1x2x16xf32>
      %cst_32 = arith.constant dense<0.000000e+00> : vector<1xf32>
      %57 = vector.multi_reduction <add>, %56, %cst_32 [1, 2] : vector<1x2x16xf32> to vector<1xf32>
      %58 = vector.shape_cast %57 : vector<1xf32> to vector<1x1x1xf32>
      %59 = vector.extract %58[0, 0, 0] : f32 from vector<1x1x1xf32>
      %60 = vector.broadcast %59 : f32 to vector<1x1xf32>
      %cst_33 = arith.constant 3.125000e-02 : f32
      %61 = vector.broadcast %cst_33 : f32 to vector<1x1xf32>
      %62 = arith.mulf %60, %61 : vector<1x1xf32>
      %63 = tpu.iota {dimensions = array<i32: 1>} : vector<1x4xi32>
      %c0_i32_34 = arith.constant 0 : i32
      %64 = vector.broadcast %c0_i32_34 : i32 to vector<1x4xi32>
      %65 = arith.cmpi eq, %63, %64 : vector<1x4xi32>
      %cst_35 = arith.constant 0.000000e+00 : f32
      %66 = vector.shape_cast %22 : vector<1x1xf32> to vector<1x1xf32>
      %67 = vector.broadcast %66 : vector<1x1xf32> to vector<1x4xf32>
      %68 = vector.broadcast %cst_35 : f32 to vector<1x4xf32>
      %69 = arith.select %65, %67, %68 : vector<1x4xi1>, vector<1x4xf32>
      %c1_i32 = arith.constant 1 : i32
      %70 = vector.broadcast %c1_i32 : i32 to vector<1x4xi32>
      %71 = arith.cmpi eq, %63, %70 : vector<1x4xi32>
      %cst_36 = arith.constant 0.000000e+00 : f32
      %72 = vector.shape_cast %40 : vector<1x1xf32> to vector<1x1xf32>
      %73 = vector.broadcast %72 : vector<1x1xf32> to vector<1x4xf32>
      %74 = vector.broadcast %cst_36 : f32 to vector<1x4xf32>
      %75 = arith.select %71, %73, %74 : vector<1x4xi1>, vector<1x4xf32>
      %76 = arith.addf %69, %75 : vector<1x4xf32>
      %c2_i32 = arith.constant 2 : i32
      %77 = vector.broadcast %c2_i32 : i32 to vector<1x4xi32>
      %78 = arith.cmpi eq, %63, %77 : vector<1x4xi32>
      %cst_37 = arith.constant 0.000000e+00 : f32
      %79 = vector.shape_cast %51 : vector<1x1xf32> to vector<1x1xf32>
      %80 = vector.broadcast %79 : vector<1x1xf32> to vector<1x4xf32>
      %81 = vector.broadcast %cst_37 : f32 to vector<1x4xf32>
      %82 = arith.select %78, %80, %81 : vector<1x4xi1>, vector<1x4xf32>
      %83 = arith.addf %76, %82 : vector<1x4xf32>
      %c3_i32 = arith.constant 3 : i32
      %84 = vector.broadcast %c3_i32 : i32 to vector<1x4xi32>
      %85 = arith.cmpi eq, %63, %84 : vector<1x4xi32>
      %cst_38 = arith.constant 0.000000e+00 : f32
      %86 = vector.shape_cast %62 : vector<1x1xf32> to vector<1x1xf32>
      %87 = vector.broadcast %86 : vector<1x1xf32> to vector<1x4xf32>
      %88 = vector.broadcast %cst_38 : f32 to vector<1x4xf32>
      %89 = arith.select %85, %87, %88 : vector<1x4xi1>, vector<1x4xf32>
      %90 = arith.addf %83, %89 : vector<1x4xf32>
      %c0_39 = arith.constant 0 : index
      %c0_40 = arith.constant 0 : index
      %91 = vector.load %arg9[%c0_39, %c0_40] : memref<1x4xf32, #tpu.memory_space<vmem>>, vector<1x4xf32>
      tpu.vector_store %arg9[%c0_39, %c0_40], %90 {strides = array<i32>} : memref<1x4xf32, #tpu.memory_space<vmem>>, vector<1x4xf32>,
    } else {
    }
    return
  }
  func.func @transform_0(%arg0: i32) -> (i32, i32) {
    %c0_i32 = arith.constant 0 : i32
    %c0_i32_0 = arith.constant 0 : i32
    return %arg0, %c0_i32 : i32, i32
  }
  func.func @transform_1(%arg0: i32) -> (i32, i32) {
    %c0_i32 = arith.constant 0 : i32
    %c0_i32_0 = arith.constant 0 : i32
    return %arg0, %c0_i32 : i32, i32
  }
  func.func @transform_2(%arg0: i32) -> (i32, i32) {
    %c0_i32 = arith.constant 0 : i32
    %c0_i32_0 = arith.constant 0 : i32
    %c0_i32_1 = arith.constant 0 : i32
    return %c0_i32, %c0_i32_0 : i32, i32
  }
  func.func @transform_3(%arg0: i32) -> (i32, i32) {
    %c0_i32 = arith.constant 0 : i32
    %c0_i32_0 = arith.constant 0 : i32
    %c0_i32_1 = arith.constant 0 : i32
    return %c0_i32, %c0_i32_0 : i32, i32
  }
  func.func @transform_4(%arg0: i32) -> (i32, i32) {
    %c0_i32 = arith.constant 0 : i32
    %c0_i32_0 = arith.constant 0 : i32
    %c0_i32_1 = arith.constant 0 : i32
    return %c0_i32, %c0_i32_0 : i32, i32
  }
  func.func @transform_5(%arg0: i32) -> (i32, i32) {
    %c0_i32 = arith.constant 0 : i32
    %c0_i32_0 = arith.constant 0 : i32
    %c0_i32_1 = arith.constant 0 : i32
    return %c0_i32, %c0_i32_0 : i32, i32
  }
  func.func @transform_6(%arg0: i32) -> (i32, i32) {
    %c0_i32 = arith.constant 0 : i32
    %c0_i32_0 = arith.constant 0 : i32
    %c0_i32_1 = arith.constant 0 : i32
    return %c0_i32, %c0_i32_0 : i32, i32
  }
  func.func @transform_7(%arg0: i32) -> (i32, i32) {
    %c0_i32 = arith.constant 0 : i32
    %c0_i32_0 = arith.constant 0 : i32
    %c0_i32_1 = arith.constant 0 : i32
    return %c0_i32, %c0_i32_0 : i32, i32
  }
  func.func @transform_8(%arg0: i32) -> (i32, i32) {
    %c0_i32 = arith.constant 0 : i32
    %c0_i32_0 = arith.constant 0 : i32
    %c0_i32_1 = arith.constant 0 : i32
    return %c0_i32, %c0_i32_0 : i32, i32
  }
}

</mosaic_0001>

<llo_original>
// kernel: tpu_custom_call.1
$region0: #{tpu_custom_call.1}
  #allocation0 [shape = 'u32[]', space=smem, size = 0x4, offset = 0x4, fixed_abs, tag = 'smem constant byte address 0x4 - core index']
  #allocation1 [shape = 'u32[144,128]{1,0:T(1,128)}', space=vmem, size = 0x12000, scoped, tag = 'internal scratch']
  #allocation2 [shape = 'f32[8,128]{1,0:T(8,128)}', space=vmem, size = 0x1000, scoped, tag = 'scratch operand']
  %s0 = inlined_call_operand.hbm [shape: f32[24,128], index: 0, kind: input, shape index: {}]
  %s1 = inlined_call_operand.hbm [shape: f32[24,128], index: 1, kind: input, shape index: {}]
  %s2 = inlined_call_operand.vmem [shape: f32[2,16], index: 2, kind: input, shape index: {}]
  %s3 = inlined_call_operand.vmem [shape: s32[2,16], index: 3, kind: input, shape index: {}]
  %s4 = inlined_call_operand.vmem [shape: f32[2,16], index: 4, kind: input, shape index: {}]
  %s5 = inlined_call_operand.vmem [shape: f32[2,16], index: 5, kind: input, shape index: {}]
  %s6 = inlined_call_operand.vmem [shape: f32[2,16], index: 6, kind: input, shape index: {}]
  %s7 = inlined_call_operand.vmem [shape: f32[2,16], index: 7, kind: input, shape index: {}]
  %s8 = inlined_call_operand.hbm [shape: f32[1,4], index: 8, kind: output, shape index: {}]
  %s9 = sld [smem:[#allocation0]]
  $region58: #{tpu_custom_call.1} parent=0
    _
  %s11 = ssub.s32 1, %s9
  %s12 = scalar_select 0, %s11, %s9
  $region1: #{tpu_custom_call.1} parent=0
    #allocation3 [shape = 'u8[12288]{0}', space=vmem, size = 0x3000, scoped, tag = 'input window, operand 0, single buffered']
    #allocation4 [shape = 's32[1]{0}', space=sflag, size = 0x4, scoped, tag = 'scoped memory for tpu_custom_call.1']
    #allocation5 [shape = 's32[1]{0}', space=sflag, size = 0x4, scoped, tag = 'scoped memory for tpu_custom_call.1']
    #allocation6 [shape = 'u8[12288]{0}', space=vmem, size = 0x3000, scoped, tag = 'input window, operand 1, single buffered']
    #allocation7 [shape = 's32[1]{0}', space=sflag, size = 0x4, scoped, tag = 'scoped memory for tpu_custom_call.1']
    #allocation8 [shape = 'u8[512]{0}', space=vmem, size = 0x400, scoped, tag = 'output window, operand 0, single buffered']
    %13 = vsyncpa [#allocation4], 0
    %14 = vsyncpa [#allocation7], 0
    %15 = vsyncpa [#allocation5], 0
    // Predicated region
    $region2: #{tpu_custom_call.1} parent=1 // pred_check
      _
    $region3: #{tpu_custom_call.1} parent=1 // pred_check_branch
      %17 = sbr.rel (0) target = $region5
    $region4: #{tpu_custom_call.1} parent=1 // pred_region
      %s19 = ssub.s32 384, 384
      %20 = vsyncadd [#allocation4], %s19
      %s21 = sshll.u32 [#allocation3], 4
      %s22 = int_to_ptr.vmem [resolvable:$true] %s21
      %27 = dma.hbm_to_vmem [thread:$0]  %s0, 384, %s22, [#allocation4], 128, 128, 8
    $region5: #{tpu_custom_call.1} parent=1 // pred_fallthru
      _
    // Predicated region
    $region6: #{tpu_custom_call.1} parent=1 // pred_check
      _
    $region7: #{tpu_custom_call.1} parent=1 // pred_check_branch
      %29 = sbr.rel (0) target = $region9
    $region8: #{tpu_custom_call.1} parent=1 // pred_region
      %s31 = ssub.s32 384, 384
      %32 = vsyncadd [#allocation7], %s31
      %s33 = sshll.u32 [#allocation6], 4
      %s34 = int_to_ptr.vmem [resolvable:$true] %s33
      %39 = dma.hbm_to_vmem [thread:$0]  %s1, 384, %s34, [#allocation7], 128, 128, 8
    $region9: #{tpu_custom_call.1} parent=1 // pred_fallthru
      _
    // Predicated region
    $region10: #{tpu_custom_call.1} parent=1 // pred_check
      _
    $region11: #{tpu_custom_call.1} parent=1 // pred_check_branch
      %41 = sbr.rel (0) target = $region13
    $region12: #{tpu_custom_call.1} parent=1 // pred_region
      _
    $region13: #{tpu_custom_call.1} parent=1 // pred_fallthru
      _
    // Predicated region
    $region14: #{tpu_custom_call.1} parent=1 // pred_check
      _
    $region15: #{tpu_custom_call.1} parent=1 // pred_check_branch
      %43 = sbr.rel (0) target = $region17
    $region16: #{tpu_custom_call.1} parent=1 // pred_region
      _
    $region17: #{tpu_custom_call.1} parent=1 // pred_fallthru
      _
    // Predicated region
    $region18: #{tpu_custom_call.1} parent=1 // pred_check
      _
    $region19: #{tpu_custom_call.1} parent=1 // pred_check_branch
      %45 = sbr.rel (0) target = $region21
    $region20: #{tpu_custom_call.1} parent=1 // pred_region
      _
    $region21: #{tpu_custom_call.1} parent=1 // pred_fallthru
      _
    // Predicated region
    $region22: #{tpu_custom_call.1} parent=1 // pred_check
      _
    $region23: #{tpu_custom_call.1} parent=1 // pred_check_branch
      %47 = sbr.rel (0) target = $region25
    $region24: #{tpu_custom_call.1} parent=1 // pred_region
      _
    $region25: #{tpu_custom_call.1} parent=1 // pred_fallthru
      _
    // Predicated region
    $region26: #{tpu_custom_call.1} parent=1 // pred_check
      _
    $region27: #{tpu_custom_call.1} parent=1 // pred_check_branch
      %49 = sbr.rel (0) target = $region29
    $region28: #{tpu_custom_call.1} parent=1 // pred_region
      _
    $region29: #{tpu_custom_call.1} parent=1 // pred_fallthru
      _
    // Predicated region
    $region30: #{tpu_custom_call.1} parent=1 // pred_check
      _
    $region31: #{tpu_custom_call.1} parent=1 // pred_check_branch
      %51 = sbr.rel (0) target = $region33
    $region32: #{tpu_custom_call.1} parent=1 // pred_region
      _
    $region33: #{tpu_custom_call.1} parent=1 // pred_fallthru
      _
    // Predicated region
    $region34: #{tpu_custom_call.1} parent=1 // pred_check
      _
    $region35: #{tpu_custom_call.1} parent=1 // pred_check_branch
      %53 = sbr.rel (0) target = $region37
    $region36: #{tpu_custom_call.1} parent=1 // pred_region
      %54 = dma.done [#allocation4], 384
    $region37: #{tpu_custom_call.1} parent=1 // pred_fallthru
      _
    // Predicated region
    $region38: #{tpu_custom_call.1} parent=1 // pred_check
      _
    $region39: #{tpu_custom_call.1} parent=1 // pred_check_branch
      %56 = sbr.rel (0) target = $region41
    $region40: #{tpu_custom_call.1} parent=1 // pred_region
      %57 = dma.done [#allocation7], 384
    $region41: #{tpu_custom_call.1} parent=1 // pred_fallthru
      _
    %p58 = scmp.eq.s32.totalorder 0, 0
    // Predicated region
    $region42: #{tpu_custom_call.1} parent=1 // pred_check
      %p59 = pneg %p58
    $region43: #{tpu_custom_call.1} parent=1 // pred_check_branch
      %61 = sbr.rel (%p59) target = $region45
    $region44: #{tpu_custom_call.1} parent=1 // pred_region
      %62 = vst [vmem:[#allocation2] sm:$0xff] 0.0
    $region45: #{tpu_custom_call.1} parent=1 // pred_fallthru
      _
    %v63 = vld [vmem:[#allocation3] sm:$0xff]
    %v64 = vld [vmem:[#allocation3 + $0x8] sm:$0xff]
    %v65 = vld [vmem:[#allocation3 + $0x10] sm:$0xff]
    %v66 = vld [vmem:[#allocation6] sm:$0xff]
    %v67 = vld [vmem:[#allocation6 + $0x8] sm:$0xff]
    %v68 = vld [vmem:[#allocation6 + $0x10] sm:$0xff]
    %v69 = vsub.f32 %v63, %v66
    %v70 = vsub.f32 %v64, %v67
    %v71 = vsub.f32 %v65, %v68
    %v72 = vand.u32 2147483647, %v69
    %v73 = vand.u32 2147483647, %v70
    %v74 = vand.u32 2147483647, %v71
    %v75 = vld [vmem:[#allocation2] sm:$0xff]
    %v76 = vadd.f32 %v72, %v73
    %v77 = vadd.f32 %v76, %v74
    %v78 = vadd.f32 %v75, %v77
    %79 = vst [vmem:[#allocation2] sm:$0xff] %v78
    // Predicated region
    $region46: #{tpu_custom_call.1} parent=1 // pred_check
      %p80 = pneg %p58
    $region47: #{tpu_custom_call.1} parent=1 // pred_check_branch
      %82 = sbr.rel (%p80) target = $region49
    $region48: #{tpu_custom_call.1} parent=1 // pred_region
      %v83 = vld [vmem:[#allocation2] sm:$0xff]
      %84 = vadd.xlane.f32.xlu0 %v83
      %v85 = vpop.xlane.xlu0 %84
      %v86 = vrot.slane %v85, 4
      %v87 = vadd.f32 %v85, %v86
      %v88 = vrot.slane %v87, 2
      %v89 = vadd.f32 %v87, %v88
      %v90 = vrot.slane %v89, 1
      %v91 = vadd.f32 %v89, %v90
      %s92 = vtos %v91
      %v93 = vstv %s92
      %v94 = vmul.f32 %v93, 0.000390625
      %v95 = vld [vmem:[%s2] sm:$0x3]
      %v96 = vadd.f32 %v95, 1.0
      %v97 = vlog2.pop %v96
      %v98 = vmul.f32 %v97, 0.6931472
      %v99 = vld [vmem:[%s3] sm:$0x3]
      %v100 = vcvt.s32.f32 %v99
      %v101 = vadd.f32 %v100, 1.0
      %v102 = vlog2.pop %v101
      %v103 = vmul.f32 %v102, 0.6931472
      %v104 = vsub.f32 %v98, %v103
      %v105 = vmul.f32 %v104, %v104
      %vm106 = vcmask 123904
      %v107 = vsel %vm106, %v105, 0.0
      %108 = vadd.xlane.f32.xlu0 %v107
      %v109 = vpop.xlane.xlu0 %108
      %v110 = vrot.slane %v109, 4
      %v111 = vadd.f32 %v109, %v110
      %v112 = vrot.slane %v111, 2
      %v113 = vadd.f32 %v111, %v112
      %v114 = vrot.slane %v113, 1
      %v115 = vadd.f32 %v113, %v114
      %s116 = vtos %v115
      %v117 = vstv %s116
      %v118 = vmul.f32 %v117, 0.03125
      %v119 = vld [vmem:[%s5] sm:$0x3]
      %v120 = vld [vmem:[%s4] sm:$0x3]
      %v121 = vsub.f32 %v119, %v120
      %v122 = vmul.f32 %v121, %v121
      %v123 = vsel %vm106, %v122, 0.0
      %124 = vadd.xlane.f32.xlu0 %v123
      %v125 = vpop.xlane.xlu0 %124
      %v126 = vrot.slane %v125, 4
      %v127 = vadd.f32 %v125, %v126
      %v128 = vrot.slane %v127, 2
      %v129 = vadd.f32 %v127, %v128
      %v130 = vrot.slane %v129, 1
      %v131 = vadd.f32 %v129, %v130
      %s132 = vtos %v131
      %v133 = vstv %s132
      %v134 = vmul.f32 %v133, 0.03125
      %v135 = vld [vmem:[%s7] sm:$0x3]
      %v136 = vld [vmem:[%s6] sm:$0x3]
      %v137 = vsub.f32 %v135, %v136
      %v138 = vmul.f32 %v137, %v137
      %v139 = vsel %vm106, %v138, 0.0
      %140 = vadd.xlane.f32.xlu0 %v139
      %v141 = vpop.xlane.xlu0 %140
      %v142 = vrot.slane %v141, 4
      %v143 = vadd.f32 %v141, %v142
      %v144 = vrot.slane %v143, 2
      %v145 = vadd.f32 %v143, %v144
      %v146 = vrot.slane %v145, 1
      %v147 = vadd.f32 %v145, %v146
      %s148 = vtos %v147
      %v149 = vstv %s148
      %v150 = vmul.f32 %v149, 0.03125
      %v151 = vlaneseq
      %v152 = vand.u32 %v151, 127
      %vm153 = vcmp.eq.s32.totalorder %v152, 0
      %v154 = vsel %vm153, %v94, 0.0
      %vm155 = vcmp.eq.s32.totalorder %v152, 1
      %v156 = vsel %vm155, %v118, 0.0
      %v157 = vadd.f32 %v154, %v156
      %vm158 = vcmp.eq.s32.totalorder %v152, 2
      %v159 = vsel %vm158, %v134, 0.0
      %v160 = vadd.f32 %v157, %v159
      %vm161 = vcmp.eq.s32.totalorder %v152, 3
      %v162 = vsel %vm161, %v150, 0.0
      %v163 = vadd.f32 %v160, %v162
      %vm164 = vcmask 24576
      %165 = vst.msk [vmem:[#allocation8] sm:$0x1] %vm164, %v163
    $region49: #{tpu_custom_call.1} parent=1 // pred_fallthru
      _
    // Predicated region
    $region50: #{tpu_custom_call.1} parent=1 // pred_check
      _
    $region51: #{tpu_custom_call.1} parent=1 // pred_check_branch
      %167 = sbr.rel (0) target = $region53
    $region52: #{tpu_custom_call.1} parent=1 // pred_region
      %s169 = ssub.s32 16, 16
      %170 = vsyncadd [#allocation5], %s169
      %s172 = sshll.u32 [#allocation8], 4
      %s173 = int_to_ptr.vmem [resolvable:$true] %s172
      %175 = dma.vmem_to_hbm [thread:$0]  %s173, 16, %s8, [#allocation5]
    $region53: #{tpu_custom_call.1} parent=1 // pred_fallthru
      _
    // Predicated region
    $region54: #{tpu_custom_call.1} parent=1 // pred_check
      _
    $region55: #{tpu_custom_call.1} parent=1 // pred_check_branch
      %177 = sbr.rel (0) target = $region57
    $region56: #{tpu_custom_call.1} parent=1 // pred_region
      %178 = dma.done [#allocation5], 16
    $region57: #{tpu_custom_call.1} parent=1 // pred_fallthru
      _
    %179 = vsyncpa [#allocation4], 1
    %180 = vsyncpa [#allocation7], 1
    %181 = vsyncpa [#allocation5], 1

</llo_original>
